<compile_context>
chip_gen: v5e
topology: v5e:2x2
jax: 0.10.0
libtpu: 0.0.40
codegen_flags: <defaults>
</compile_context>

<pallas_src>
import jax
import jax.numpy as jnp
from jax.experimental import pallas as pl
from jax.experimental.pallas import tpu as pltpu


def _round_up(x, m):
    return (x + m - 1) // m * m


def _make_gather_kernel(T, D):
    """Kernel gathering T embedding rows per grid step with D outstanding DMAs."""

    def kernel(ids_ref, table_hbm, out_ref, sem):
        # ids_ref   : SMEM (n_pad,) int32 token ids (scalar prefetch)
        # table_hbm : raw HBM ref (VOCAB, H)
        # out_ref   : VMEM (T, H) output tile for this grid step
        # sem       : DMA semaphore array (D,)
        base = pl.program_id(0) * T

        def start_dma(t):
            tok = ids_ref[base + t]
            pltpu.make_async_copy(
                table_hbm.at[pl.ds(tok, 1)],   # (1, H) row in HBM
                out_ref.at[pl.ds(t, 1)],       # (1, H) row of the output tile
                sem.at[t % D],
            ).start()

        def wait_dma(t):
            # Wait only needs the semaphore + copy size; use a fixed source row
            # so the wait does not re-read the token id from SMEM.
            pltpu.make_async_copy(
                table_hbm.at[pl.ds(0, 1)],
                out_ref.at[pl.ds(t, 1)],
                sem.at[t % D],
            ).wait()

        # Prime D outstanding gathers.
        @pl.loop(0, D)
        def _prime(t):
            start_dma(t)

        # Steady state: wait for row t, immediately reuse its slot for row t+D.
        @pl.loop(0, T - D)
        def _steady(t):
            wait_dma(t)
            start_dma(t + D)

        # Drain the tail.
        @pl.loop(T - D, T)
        def _drain(t):
            wait_dma(t)

    return kernel


def llama_embeddings_forward(input_ids, emb_table, position_ids=None, *,
                             chunk=512, max_outstanding=32,
                             tile_vmem_budget=24 * 1024 * 1024):
    """Pallas TPU implementation of LlamaEmbeddings_.forward.

    input_ids : (B, S) int token ids
    emb_table : (VOCAB, H) word-embedding table (f32 or bf16)
    returns   : (B, S, H) hidden states (same dtype as emb_table)
    """
    del position_ids  # Llama embeddings ignore position_ids (RoPE applied later)

    B, S = input_ids.shape
    vocab, H = emb_table.shape
    n_tok = B * S
    itemsize = jnp.dtype(emb_table.dtype).itemsize

    # Tokens per grid step: sublane-dense (multiple of 8), capped by `chunk`
    # and by the VMEM budget for the double-buffered (T, H) output tile.
    t_cap = max(8, (tile_vmem_budget // (2 * H * itemsize)) // 8 * 8)
    T = min(_round_up(max(chunk, 8), 8), t_cap, _round_up(n_tok, 8))
    D = max(1, min(max_outstanding, T))    # outstanding row DMAs per step
    n_pad = _round_up(n_tok, T)

    # Clamp ids (an OOB id would drive the gather DMA outside the table alloc).
    flat_ids = jnp.clip(input_ids.reshape(n_tok).astype(jnp.int32), 0, vocab - 1)
    if n_pad != n_tok:
        flat_ids = jnp.pad(flat_ids, (0, n_pad - n_tok))  # pad with valid id 0

    # VMEM: double-buffered (T, H) output tile + headroom.
    vmem_limit = int(min(100 * 1024 * 1024,
                         max(16 * 1024 * 1024, 4 * T * H * itemsize + (1 << 20))))

    out_flat = pl.pallas_call(
        _make_gather_kernel(T, D),
        out_shape=jax.ShapeDtypeStruct((n_pad, H), emb_table.dtype),
        grid_spec=pltpu.PrefetchScalarGridSpec(
            num_scalar_prefetch=1,
            grid=(n_pad // T,),
            in_specs=[
                pl.BlockSpec(memory_space=pl.ANY),   # table stays in HBM
            ],
            out_specs=pl.BlockSpec((T, H), lambda i, ids: (i, 0)),
            scratch_shapes=[pltpu.SemaphoreType.DMA((D,))],
        ),
        compiler_params=pltpu.CompilerParams(
            dimension_semantics=("parallel",),       # shard chunks across TCs (v7x)
            vmem_limit_bytes=vmem_limit,
        ),
        cost_estimate=pl.CostEstimate(
            flops=0,
            transcendentals=0,
            bytes_accessed=int(2 * n_pad * H * itemsize + n_pad * 4),
        ),
    )(flat_ids, emb_table)

    return out_flat[:n_tok].reshape(B, S, H)


if __name__ == "__main__":
    # Small, deterministic synthetic setup (no checkpoint loading).
    # S chosen so the example exercises multiple grid steps and the pad path
    # (n_tok = 144, chunk=64 -> T=64, n_pad=192, grid=(3,), D=32).
    B, S, H, VOCAB = 2, 72, 128, 512

    key = jax.random.PRNGKey(0)
    k_tab, k_ids = jax.random.split(key)

    emb_table = jax.random.normal(k_tab, (VOCAB, H), dtype=jnp.float32)
    input_ids = jax.random.randint(k_ids, (B, S), 0, VOCAB, dtype=jnp.int32)

    # TODO(synk): sequence-parallel (combine_batch_seqlen_dim + all-gather) path
    # not modeled — no process_group in this single-device setup.
    hidden_states = llama_embeddings_forward(input_ids, emb_table, chunk=64)
    hidden_states = jax.block_until_ready(hidden_states)

    # Reference check against plain JAX embedding lookup.
    ref = jnp.take(emb_table, input_ids, axis=0)
    assert hidden_states.shape == (B, S, H)
    assert jnp.allclose(hidden_states, ref), "mismatch vs reference gather"

    print("KERNEL_OK")
</pallas_src>

<mosaic_0001>
module attributes {stable_mosaic.version = 11 : i64} {
  func.func @kernel(%arg0: i32, %arg1: memref<192xi32, #tpu.memory_space<smem>>, %arg2: memref<512x128xf32, #tpu.memory_space<any>>, %arg3: memref<64x128xf32, #tpu.memory_space<vmem>>, %arg4: memref<32x!tpu.dma_semaphore, #tpu.memory_space<semaphore_mem>>) attributes {dimension_semantics = [#tpu.dimension_semantics<parallel>], iteration_bounds = array<i64: 3>, scalar_prefetch = 1 : i64, scratch_operands = 1 : i64, tpu.core_type = #tpu.core_type<tc>, window_params = [{}, {transform_indices = @transform_1, window_bounds = array<i64: 64, 128>}]} {
    %c64_i32 = arith.constant 64 : i32
    %0 = arith.muli %arg0, %c64_i32 : i32
    %c0_i32 = arith.constant 0 : i32
    %c32_i32 = arith.constant 32 : i32
    %1 = arith.addi %c0_i32, %c32_i32 : i32
    %c1_i32 = arith.constant 1 : i32
    scf.for %arg5 = %c0_i32 to %1 step %c1_i32  : i32 {
      %c1_i32_9 = arith.constant 1 : i32
      %4 = arith.muli %arg5, %c1_i32_9 : i32
      %c0_i32_10 = arith.constant 0 : i32
      %5 = arith.addi %c0_i32_10, %4 : i32
      %6 = arith.addi %0, %5 : i32
      %7 = arith.index_cast %6 : i32 to index
      %8 = memref.load %arg1[%7] : memref<192xi32, #tpu.memory_space<smem>>
      %c32_i32_11 = arith.constant 32 : i32
      %c0_i32_12 = arith.constant 0 : i32
      %9 = arith.cmpi eq, %c32_i32_11, %c0_i32_12 : i32
      %c1_i32_13 = arith.constant 1 : i32
      %10 = arith.select %9, %c1_i32_13, %c32_i32_11 : i32
      %11 = arith.remsi %5, %10 : i32
      %c0_i32_14 = arith.constant 0 : i32
      %12 = arith.cmpi ne, %11, %c0_i32_14 : i32
      %c0_i32_15 = arith.constant 0 : i32
      %13 = arith.cmpi slt, %11, %c0_i32_15 : i32
      %c0_i32_16 = arith.constant 0 : i32
      %14 = arith.cmpi slt, %10, %c0_i32_16 : i32
      %15 = arith.xori %13, %14 : i1
      %16 = arith.andi %15, %12 : i1
      %17 = arith.addi %11, %10 : i32
      %18 = arith.select %16, %17, %11 : i32
      %c0_i32_17 = arith.constant 0 : i32
      %19 = tpu.memref_slice %arg2[%8, %c0_i32_17] : memref<512x128xf32, #tpu.memory_space<any>> -> memref<1x128xf32, #tpu.memory_space<any>>
      %c0_i32_18 = arith.constant 0 : i32
      %20 = tpu.memref_slice %arg3[%5, %c0_i32_18] : memref<64x128xf32, #tpu.memory_space<vmem>> -> memref<1x128xf32, #tpu.memory_space<vmem>>
      %21 = tpu.memref_slice %arg4[%18] : memref<32x!tpu.dma_semaphore, #tpu.memory_space<semaphore_mem>> -> memref<1x!tpu.dma_semaphore, #tpu.memory_space<semaphore_mem>>
      %22 = tpu.memref_squeeze %21 : memref<1x!tpu.dma_semaphore, #tpu.memory_space<semaphore_mem>> -> memref<!tpu.dma_semaphore, #tpu.memory_space<semaphore_mem>>
      tpu.enqueue_dma source(%19 : memref<1x128xf32, #tpu.memory_space<any>>) target(%20 : memref<1x128xf32, #tpu.memory_space<vmem>>) target_semaphore(%22 : memref<!tpu.dma_semaphore, #tpu.memory_space<semaphore_mem>>)
    }
    %c32_i32_0 = arith.constant 32 : i32
    %c0_i32_1 = arith.constant 0 : i32
    %c32_i32_2 = arith.constant 32 : i32
    %2 = arith.addi %c0_i32_1, %c32_i32_2 : i32
    %c1_i32_3 = arith.constant 1 : i32
    scf.for %arg5 = %c0_i32_1 to %2 step %c1_i32_3  : i32 {
      %c1_i32_9 = arith.constant 1 : i32
      %4 = arith.muli %arg5, %c1_i32_9 : i32
      %c0_i32_10 = arith.constant 0 : i32
      %5 = arith.addi %c0_i32_10, %4 : i32
      %c32_i32_11 = arith.constant 32 : i32
      %c0_i32_12 = arith.constant 0 : i32
      %6 = arith.cmpi eq, %c32_i32_11, %c0_i32_12 : i32
      %c1_i32_13 = arith.constant 1 : i32
      %7 = arith.select %6, %c1_i32_13, %c32_i32_11 : i32
      %8 = arith.remsi %5, %7 : i32
      %c0_i32_14 = arith.constant 0 : i32
      %9 = arith.cmpi ne, %8, %c0_i32_14 : i32
      %c0_i32_15 = arith.constant 0 : i32
      %10 = arith.cmpi slt, %8, %c0_i32_15 : i32
      %c0_i32_16 = arith.constant 0 : i32
      %11 = arith.cmpi slt, %7, %c0_i32_16 : i32
      %12 = arith.xori %10, %11 : i1
      %13 = arith.andi %12, %9 : i1
      %14 = arith.addi %8, %7 : i32
      %15 = arith.select %13, %14, %8 : i32
      %c0_i32_17 = arith.constant 0 : i32
      %c0_i32_18 = arith.constant 0 : i32
      %16 = tpu.memref_slice %arg2[%c0_i32_17, %c0_i32_18] : memref<512x128xf32, #tpu.memory_space<any>> -> memref<1x128xf32, #tpu.memory_space<any>>
      %c0_i32_19 = arith.constant 0 : i32
      %17 = tpu.memref_slice %arg3[%5, %c0_i32_19] : memref<64x128xf32, #tpu.memory_space<vmem>> -> memref<1x128xf32, #tpu.memory_space<vmem>>
      %18 = tpu.memref_slice %arg4[%15] : memref<32x!tpu.dma_semaphore, #tpu.memory_space<semaphore_mem>> -> memref<1x!tpu.dma_semaphore, #tpu.memory_space<semaphore_mem>>
      %19 = tpu.memref_squeeze %18 : memref<1x!tpu.dma_semaphore, #tpu.memory_space<semaphore_mem>> -> memref<!tpu.dma_semaphore, #tpu.memory_space<semaphore_mem>>
      tpu.wait_dma2 semaphore(%19 : memref<!tpu.dma_semaphore, #tpu.memory_space<semaphore_mem>>) src(%16 : memref<1x128xf32, #tpu.memory_space<any>>) dst(%17 : memref<1x128xf32, #tpu.memory_space<vmem>>)
      %c32_i32_20 = arith.constant 32 : i32
      %20 = arith.addi %5, %c32_i32_20 : i32
      %21 = arith.addi %0, %20 : i32
      %22 = arith.index_cast %21 : i32 to index
      %23 = memref.load %arg1[%22] : memref<192xi32, #tpu.memory_space<smem>>
      %c32_i32_21 = arith.constant 32 : i32
      %c0_i32_22 = arith.constant 0 : i32
      %24 = arith.cmpi eq, %c32_i32_21, %c0_i32_22 : i32
      %c1_i32_23 = arith.constant 1 : i32
      %25 = arith.select %24, %c1_i32_23, %c32_i32_21 : i32
      %26 = arith.remsi %20, %25 : i32
      %c0_i32_24 = arith.constant 0 : i32
      %27 = arith.cmpi ne, %26, %c0_i32_24 : i32
      %c0_i32_25 = arith.constant 0 : i32
      %28 = arith.cmpi slt, %26, %c0_i32_25 : i32
      %c0_i32_26 = arith.constant 0 : i32
      %29 = arith.cmpi slt, %25, %c0_i32_26 : i32
      %30 = arith.xori %28, %29 : i1
      %31 = arith.andi %30, %27 : i1
      %32 = arith.addi %26, %25 : i32
      %33 = arith.select %31, %32, %26 : i32
      %c0_i32_27 = arith.constant 0 : i32
      %34 = tpu.memref_slice %arg2[%23, %c0_i32_27] : memref<512x128xf32, #tpu.memory_space<any>> -> memref<1x128xf32, #tpu.memory_space<any>>
      %c0_i32_28 = arith.constant 0 : i32
      %35 = tpu.memref_slice %arg3[%20, %c0_i32_28] : memref<64x128xf32, #tpu.memory_space<vmem>> -> memref<1x128xf32, #tpu.memory_space<vmem>>
      %36 = tpu.memref_slice %arg4[%33] : memref<32x!tpu.dma_semaphore, #tpu.memory_space<semaphore_mem>> -> memref<1x!tpu.dma_semaphore, #tpu.memory_space<semaphore_mem>>
      %37 = tpu.memref_squeeze %36 : memref<1x!tpu.dma_semaphore, #tpu.memory_space<semaphore_mem>> -> memref<!tpu.dma_semaphore, #tpu.memory_space<semaphore_mem>>
      tpu.enqueue_dma source(%34 : memref<1x128xf32, #tpu.memory_space<any>>) target(%35 : memref<1x128xf32, #tpu.memory_space<vmem>>) target_semaphore(%37 : memref<!tpu.dma_semaphore, #tpu.memory_space<semaphore_mem>>)
    }
    %c32_i32_4 = arith.constant 32 : i32
    %c0_i32_5 = arith.constant 0 : i32
    %c32_i32_6 = arith.constant 32 : i32
    %3 = arith.addi %c0_i32_5, %c32_i32_6 : i32
    %c1_i32_7 = arith.constant 1 : i32
    scf.for %arg5 = %c0_i32_5 to %3 step %c1_i32_7  : i32 {
      %c1_i32_9 = arith.constant 1 : i32
      %4 = arith.muli %arg5, %c1_i32_9 : i32
      %c32_i32_10 = arith.constant 32 : i32
      %5 = arith.addi %c32_i32_10, %4 : i32
      %c32_i32_11 = arith.constant 32 : i32
      %c0_i32_12 = arith.constant 0 : i32
      %6 = arith.cmpi eq, %c32_i32_11, %c0_i32_12 : i32
      %c1_i32_13 = arith.constant 1 : i32
      %7 = arith.select %6, %c1_i32_13, %c32_i32_11 : i32
      %8 = arith.remsi %5, %7 : i32
      %c0_i32_14 = arith.constant 0 : i32
      %9 = arith.cmpi ne, %8, %c0_i32_14 : i32
      %c0_i32_15 = arith.constant 0 : i32
      %10 = arith.cmpi slt, %8, %c0_i32_15 : i32
      %c0_i32_16 = arith.constant 0 : i32
      %11 = arith.cmpi slt, %7, %c0_i32_16 : i32
      %12 = arith.xori %10, %11 : i1
      %13 = arith.andi %12, %9 : i1
      %14 = arith.addi %8, %7 : i32
      %15 = arith.select %13, %14, %8 : i32
      %c0_i32_17 = arith.constant 0 : i32
      %c0_i32_18 = arith.constant 0 : i32
      %16 = tpu.memref_slice %arg2[%c0_i32_17, %c0_i32_18] : memref<512x128xf32, #tpu.memory_space<any>> -> memref<1x128xf32, #tpu.memory_space<any>>
      %c0_i32_19 = arith.constant 0 : i32
      %17 = tpu.memref_slice %arg3[%5, %c0_i32_19] : memref<64x128xf32, #tpu.memory_space<vmem>> -> memref<1x128xf32, #tpu.memory_space<vmem>>
      %18 = tpu.memref_slice %arg4[%15] : memref<32x!tpu.dma_semaphore, #tpu.memory_space<semaphore_mem>> -> memref<1x!tpu.dma_semaphore, #tpu.memory_space<semaphore_mem>>
      %19 = tpu.memref_squeeze %18 : memref<1x!tpu.dma_semaphore, #tpu.memory_space<semaphore_mem>> -> memref<!tpu.dma_semaphore, #tpu.memory_space<semaphore_mem>>
      tpu.wait_dma2 semaphore(%19 : memref<!tpu.dma_semaphore, #tpu.memory_space<semaphore_mem>>) src(%16 : memref<1x128xf32, #tpu.memory_space<any>>) dst(%17 : memref<1x128xf32, #tpu.memory_space<vmem>>)
    }
    %c32_i32_8 = arith.constant 32 : i32
    return
  }
  func.func @transform_1(%arg0: i32, %arg1: memref<192xi32, #tpu.memory_space<smem>>) -> (i32, i32) {
    %c0_i32 = arith.constant 0 : i32
    %c0_i32_0 = arith.constant 0 : i32
    return %arg0, %c0_i32 : i32, i32
  }
}

</mosaic_0001>

<llo_original>
// kernel: tpu_custom_call.1
$region0: #{tpu_custom_call.1}
  #allocation0 [shape = 'u32[]', space=smem, size = 0x4, offset = 0x4, fixed_abs, tag = 'smem constant byte address 0x4 - core index']
  #allocation1 [shape = 'u32[72,128]{1,0:T(1,128)}', space=vmem, size = 0x9000, scoped, tag = 'internal scratch']
  #allocation2 [shape = 's32[32]{0}', space=sflag, size = 0x80, scoped, tag = 'scratch operand']
  #allocation3 [shape = 's32[1]{0}', space=sflag, size = 0x4, scoped, tag = 'scoped memory for tpu_custom_call.1']
  #allocation4 [shape = 'u8[1024]{0}', space=smem, size = 0x400, scoped, tag = 'prefetched SMEM operand 0']
  #allocation7 [shape = 's32[]', space=sflag, size = 0x4, offset = 0, fixed_abs, tag = 'sflag constant byte address 0x0 - dummy sync flag']
  #allocation8 [shape = 's32[]', space=sflag, size = 0x4, offset = 0, fixed_abs, tag = 'sflag constant byte address 0x0 - dummy sync flag']
  #allocation9 [shape = 'u32[]', space=smem, size = 0x4, offset = 0x44, fixed_abs, tag = 'smem constant byte address 0x44 - assertion arg 0']
  #allocation10 [shape = 'u32[]', space=smem, size = 0x4, offset = 0x48, fixed_abs, tag = 'smem constant byte address 0x48 - assertion arg 1']
  #allocation11 [shape = 's32[]', space=sflag, size = 0x4, offset = 0, fixed_abs, tag = 'sflag constant byte address 0x0 - dummy sync flag']
  #allocation12 [shape = 's32[]', space=sflag, size = 0x4, offset = 0, fixed_abs, tag = 'sflag constant byte address 0x0 - dummy sync flag']
  %s0 = inlined_call_operand.hbm [shape: s32[192], index: 0, kind: input, shape index: {}]
  %s1 = inlined_call_operand.hbm [shape: f32[512,128], index: 1, kind: input, shape index: {}]
  %s2 = inlined_call_operand.hbm [shape: f32[192,128], index: 2, kind: output, shape index: {}]
  %s3 = sld [smem:[#allocation0]]
  $region54: #{tpu_custom_call.1} parent=0
    _
  %s5 = ssub.s32 1, %s3
  %s6 = scalar_select 0, %s5, %s3
  %s8 = sshll.u32 %s0, 4
  %s9 = int_to_ptr.hbm [resolvable:$true] %s8
  %11 = dma.hbm_to_smem %s9, 32, [#allocation4], [#allocation3]
  %13 = dma.done [#allocation3], 32
  %14 = sfence
  $region1: #{tpu_custom_call.1} parent=0
    #allocation5 [shape = 'u8[65536]{0}', space=vmem, size = 0x10000, scoped, tag = 'output window, operand 0']
    #allocation6 [shape = 's32[2]{0}', space=sflag, size = 0x8, scoped, tag = 'scoped memory for tpu_custom_call.1']
    %15 = vsyncpa [#allocation6], 0
    %s16 = scalar_lea.sflag [#allocation6], 1
    %17 = vsyncpa %s16, 0
    loop: start=0, step=1, limit=4
    $region2: #{tpu_custom_call.1} parent=1 // loop_pre_header
      _
    $region3: #{tpu_custom_call.1} parent=1 // loop_header
      %s19 = sphi 0, %s23
      %p20 = scmp.ge.s32.totalorder %s19, 4
      %s28 = sphi 0, %s30
      %s31 = sphi 0, %s28
      %s41 = sphi 0, %s31
    $region4: #{tpu_custom_call.1} parent=1 // loop_header_branch
      %22 = sbr.rel (%p20) target = $region8
    $region5: #{tpu_custom_call.1} parent=1 // loop_body
      %s24 = ssub.s32 %s19, 1
      %s25 = sadd.s32 %s19, 1
      %s26 = ssub.s32 %s19, %s25
      %p27 = scmp.eq.s32.totalorder %s26, 0
      %s29 = sadd.s32 %s28, 1
      %s30 = scalar_select %p27, %s28, %s29
      %p32 = pneg %p27
      %p33 = scmp.eq.s32.totalorder %s19, 2
      %p34 = por %p32, %p33
      %p35 = scmp.ne.s32.totalorder %s28, %s31
      %p36 = scmp.eq.s32.totalorder %s19, 0
      %p37 = por %p35, %p36
      %p38 = scmp.ne.s32.totalorder %s28, %s31
      %p39 = scmp.eq.s32.totalorder %s24, 2
      %p40 = por %p38, %p39
      %p42 = scmp.ne.s32.totalorder %s31, %s41
      %p43 = scmp.eq.s32.totalorder %s24, 0
      %p44 = por %p42, %p43
      %p45 = scmp.lt.s32.totalorder %s19, 3
      // Predicated region
      $region9: #{tpu_custom_call.1} parent=5 // pred_check
        %p46 = pneg %p45
      $region10: #{tpu_custom_call.1} parent=5 // pred_check_branch
        %48 = sbr.rel (%p46) target = $region12
      $region11: #{tpu_custom_call.1} parent=5 // pred_region
        %p49 = pneg %p37
        %p50 = pneg %p34
        %s51 = sand.u32 %s28, 1
        %s52 = scalar_lea.sflag [#allocation6], %s51
        %s53 = sand.u32 %s28, 1
        %s54 = smul.addr %s53, 64
        %s55 = scalar_lea.vmem [#allocation5], %s54
        %s56 = smul.u32 8, %s19
        %s57 = smul.u32 %s19, 64
        loop: start=0, step=1, limit=32
        $region13: #{tpu_custom_call.1} parent=11 // loop_pre_header
          _
        $region14: #{tpu_custom_call.1} parent=11 // loop_header
          %s59 = sphi 0, %s63
          %p60 = scmp.ge.s32.totalorder %s59, 32
        $region15: #{tpu_custom_call.1} parent=11 // loop_header_branch
          %62 = sbr.rel (%p60) target = $region19
        $region16: #{tpu_custom_call.1} parent=11 // loop_body
          %s64 = sadd.s32 %s57, %s59
          %s65 = sld [smem:[#allocation4 + %s64]]
          %p66 = scmp.lt.s32.totalorder %s59, 0
          %s67 = ssub.s32 0, %s59
          %s68 = scalar_select %p66, %s67, %s59
          %s69 = sand.u32 %s68, 31
          %s70 = ssub.s32 0, %s69
          %s71 = scalar_select %p66, %s70, %s69
          %p72 = scmp.ne.s32.totalorder %s71, 0
          %p73 = scmp.lt.s32.totalorder %s71, 0
          %p74 = pnand %p73, %p72
          %p75 = pneg %p74
          %s76 = sadd.s32 %s71, 32
          %s77 = scalar_select %p75, %s76, %s71
          %s78 = scalar_lea.hbm %s1, %s65
          %s79 = scalar_lea.vmem %s55, %s59 [#allocation5]
          %s80 = scalar_lea.sflag [#allocation2], %s77
          // Predicated region
          $region20: #{tpu_custom_call.1} parent=16 // pred_check
            _
          $region21: #{tpu_custom_call.1} parent=16 // pred_check_branch
            %82 = sbr.rel target = $region23
          $region22: #{tpu_custom_call.1} parent=16 // pred_region
            %83 = sst [smem:[#allocation9]] [#allocation8]
            %84 = sst [smem:[#allocation10]] [#allocation7]
          $region23: #{tpu_custom_call.1} parent=16 // pred_fallthru
            _
          %86 = shalt.err (0)
          %s88 = sshll.u32 %s78, 4
          %s89 = int_to_ptr.hbm [resolvable:$true] %s88
          %s90 = sshll.u32 %s79, 4
          %s91 = int_to_ptr.vmem [resolvable:$true] %s90
          %93 = dma.hbm_to_vmem [thread:$0]  %s89, 16, %s91, %s80
        $region17: #{tpu_custom_call.1} parent=11 // loop_footer
          %s63 = sadd.s32 1, %s59
        $region18: #{tpu_custom_call.1} parent=11 // loop_footer_branch
          %58 = sbr.rel target = $region14
        $region19: #{tpu_custom_call.1} parent=11 // loop_exit
          _
        loop: start=0, step=1, limit=32
        $region24: #{tpu_custom_call.1} parent=11 // loop_pre_header
          _
        $region25: #{tpu_custom_call.1} parent=11 // loop_header
          %s95 = sphi 0, %s99
          %p96 = scmp.ge.s32.totalorder %s95, 32
        $region26: #{tpu_custom_call.1} parent=11 // loop_header_branch
          %98 = sbr.rel (%p96) target = $region30
        $region27: #{tpu_custom_call.1} parent=11 // loop_body
          %p100 = scmp.lt.s32.totalorder %s95, 0
          %s101 = ssub.s32 0, %s95
          %s102 = scalar_select %p100, %s101, %s95
          %s103 = sand.u32 %s102, 31
          %s104 = ssub.s32 0, %s103
          %s105 = scalar_select %p100, %s104, %s103
          %p106 = scmp.ne.s32.totalorder %s105, 0
          %p107 = scmp.lt.s32.totalorder %s105, 0
          %p108 = pnand %p107, %p106
          %p109 = pneg %p108
          %s110 = sadd.s32 %s105, 32
          %s111 = scalar_select %p109, %s110, %s105
          %s112 = scalar_lea.sflag [#allocation2], %s111
          %s113 = smul.u32 1, 1
          %s114 = sshll.u32 %s113, 4
          %115 = dma.done %s112, %s114
          %s116 = sadd.s32 %s95, 32
          %s117 = sadd.s32 %s57, %s116
          %s118 = sld [smem:[#allocation4 + %s117]]
          %p119 = scmp.lt.s32.totalorder %s116, 0
          %s120 = ssub.s32 0, %s116
          %s121 = scalar_select %p119, %s120, %s116
          %s122 = sand.u32 %s121, 31
          %s123 = ssub.s32 0, %s122
          %s124 = scalar_select %p119, %s123, %s122
          %p125 = scmp.ne.s32.totalorder %s124, 0
          %p126 = scmp.lt.s32.totalorder %s124, 0
          %p127 = pnand %p126, %p125
          %p128 = pneg %p127
          %s129 = sadd.s32 %s124, 32
          %s130 = scalar_select %p128, %s129, %s124
          %s131 = scalar_lea.hbm %s1, %s118
          %s132 = scalar_lea.vmem %s55, %s116 [#allocation5]
          %s133 = scalar_lea.sflag [#allocation2], %s130
          // Predicated region
          $region31: #{tpu_custom_call.1} parent=27 // pred_check
            _
          $region32: #{tpu_custom_call.1} parent=27 // pred_check_branch
            %135 = sbr.rel target = $region34
          $region33: #{tpu_custom_call.1} parent=27 // pred_region
            %136 = sst [smem:[#allocation9]] [#allocation12]
            %137 = sst [smem:[#allocation10]] [#allocation11]
          $region34: #{tpu_custom_call.1} parent=27 // pred_fallthru
            _
          %139 = shalt.err (0)
          %s141 = sshll.u32 %s131, 4
          %s142 = int_to_ptr.hbm [resolvable:$true] %s141
          %s143 = sshll.u32 %s132, 4
          %s144 = int_to_ptr.vmem [resolvable:$true] %s143
          %146 = dma.hbm_to_vmem [thread:$0]  %s142, 16, %s144, %s133
        $region28: #{tpu_custom_call.1} parent=11 // loop_footer
          %s99 = sadd.s32 1, %s95
        $region29: #{tpu_custom_call.1} parent=11 // loop_footer_branch
          %94 = sbr.rel target = $region25
        $region30: #{tpu_custom_call.1} parent=11 // loop_exit
          _
        loop: start=0, step=1, limit=32
        $region35: #{tpu_custom_call.1} parent=11 // loop_pre_header
          _
        $region36: #{tpu_custom_call.1} parent=11 // loop_header
          %s148 = sphi 0, %s152
          %p149 = scmp.ge.s32.totalorder %s148, 32
        $region37: #{tpu_custom_call.1} parent=11 // loop_header_branch
          %151 = sbr.rel (%p149) target = $region41
        $region38: #{tpu_custom_call.1} parent=11 // loop_body
          %s153 = sadd.s32 %s148, 32
          %p154 = scmp.lt.s32.totalorder %s153, 0
          %s155 = ssub.s32 0, %s153
          %s156 = scalar_select %p154, %s155, %s153
          %s157 = sand.u32 %s156, 31
          %s158 = ssub.s32 0, %s157
          %s159 = scalar_select %p154, %s158, %s157
          %p160 = scmp.ne.s32.totalorder %s159, 0
          %p161 = scmp.lt.s32.totalorder %s159, 0
          %p162 = pnand %p161, %p160
          %p163 = pneg %p162
          %s164 = sadd.s32 %s159, 32
          %s165 = scalar_select %p163, %s164, %s159
          %s166 = scalar_lea.sflag [#allocation2], %s165
          %s167 = smul.u32 1, 1
          %s168 = sshll.u32 %s167, 4
          %169 = dma.done %s166, %s168
        $region39: #{tpu_custom_call.1} parent=11 // loop_footer
          %s152 = sadd.s32 1, %s148
        $region40: #{tpu_custom_call.1} parent=11 // loop_footer_branch
          %147 = sbr.rel target = $region36
        $region41: #{tpu_custom_call.1} parent=11 // loop_exit
          _
        %s170 = sand.u32 %s28, 1
        %s171 = scalar_lea.sflag [#allocation6], %s170
        %s172 = sand.u32 %s28, 1
        %s173 = smul.addr %s172, 64
        %s174 = scalar_lea.vmem [#allocation5], %s173
        // Predicated region
        $region42: #{tpu_custom_call.1} parent=11 // pred_check
          %p175 = pneg %p34
        $region43: #{tpu_custom_call.1} parent=11 // pred_check_branch
          %177 = sbr.rel (%p175) target = $region45
        $region44: #{tpu_custom_call.1} parent=11 // pred_region
          %s178 = smul.u32 8, %s19
          %180 = vsyncadd %s171, 0
          %s181 = smul.addr %s178, 8
          %s182 = scalar_lea.hbm %s2, %s181
          %s183 = sshll.u32 %s174, 4
          %s184 = int_to_ptr.vmem [resolvable:$true] %s183
          %s185 = sshll.u32 %s182, 4
          %s186 = int_to_ptr.hbm [resolvable:$true] %s185
          %191 = dma.vmem_to_hbm [thread:$0]  %s184, 1024, %s186, %s171, 128, 128, 8
        $region45: #{tpu_custom_call.1} parent=11 // pred_fallthru
          _
      $region12: #{tpu_custom_call.1} parent=5 // pred_fallthru
        _
      %p192 = scmp.le.s32.totalorder 1, %s19
      // Predicated region
      $region46: #{tpu_custom_call.1} parent=5 // pred_check
        %p193 = pneg %p192
      $region47: #{tpu_custom_call.1} parent=5 // pred_check_branch
        %195 = sbr.rel (%p193) target = $region49
      $region48: #{tpu_custom_call.1} parent=5 // pred_region
        %s196 = ssub.s32 %s19, 1
        // Predicated region
        $region50: #{tpu_custom_call.1} parent=48 // pred_check
          %p197 = pneg %p40
        $region51: #{tpu_custom_call.1} parent=48 // pred_check_branch
          %199 = sbr.rel (%p197) target = $region53
        $region52: #{tpu_custom_call.1} parent=48 // pred_region
          %s200 = sand.u32 %s31, 1
          %s201 = scalar_lea.sflag [#allocation6], %s200
          %s202 = sand.u32 %s31, 1
          %s203 = smul.addr %s202, 64
          %s204 = scalar_lea.vmem [#allocation5], %s203
          %206 = dma.done %s201, 1024
        $region53: #{tpu_custom_call.1} parent=48 // pred_fallthru
          _
      $region49: #{tpu_custom_call.1} parent=5 // pred_fallthru
        _
    $region6: #{tpu_custom_call.1} parent=1 // loop_footer
      %s23 = sadd.s32 1, %s19
    $region7: #{tpu_custom_call.1} parent=1 // loop_footer_branch
      %18 = sbr.rel target = $region3
    $region8: #{tpu_custom_call.1} parent=1 // loop_exit
      _
    %207 = vsyncpa [#allocation6], 1
    %s208 = scalar_lea.sflag [#allocation6], 1
    %209 = vsyncpa %s208, 1
  %210 = vsyncmov [#allocation2]
  %s211 = vpop.sfrf %210
  %p212 = scmp.eq.s32.totalorder %s211, 0
  %p213 = pneg %p212
  %215 = shalt.err (%p213)
  %s216 = scalar_lea.sflag [#allocation2], 1
  %217 = vsyncmov %s216
  %s218 = vpop.sfrf %217
  %p219 = scmp.eq.s32.totalorder %s218, 0
  %p220 = pneg %p219
  %222 = shalt.err (%p220)
  %s223 = scalar_lea.sflag [#allocation2], 2
  %224 = vsyncmov %s223
  %s225 = vpop.sfrf %224
  %p226 = scmp.eq.s32.totalorder %s225, 0
  %p227 = pneg %p226
  %229 = shalt.err (%p227)
  %s230 = scalar_lea.sflag [#allocation2], 3
  %231 = vsyncmov %s230
  %s232 = vpop.sfrf %231
  %p233 = scmp.eq.s32.totalorder %s232, 0
  %p234 = pneg %p233
  %236 = shalt.err (%p234)
  %s237 = scalar_lea.sflag [#allocation2], 4
  %238 = vsyncmov %s237
  %s239 = vpop.sfrf %238
  %p240 = scmp.eq.s32.totalorder %s239, 0
  %p241 = pneg %p240
  %243 = shalt.err (%p241)
  %s244 = scalar_lea.sflag [#allocation2], 5
  %245 = vsyncmov %s244
  %s246 = vpop.sfrf %245
  %p247 = scmp.eq.s32.totalorder %s246, 0
  %p248 = pneg %p247
  %250 = shalt.err (%p248)
  %s251 = scalar_lea.sflag [#allocation2], 6
  %252 = vsyncmov %s251
  %s253 = vpop.sfrf %252
  %p254 = scmp.eq.s32.totalorder %s253, 0
  %p255 = pneg %p254
  %257 = shalt.err (%p255)
  %s258 = scalar_lea.sflag [#allocation2], 7
  %259 = vsyncmov %s258
  %s260 = vpop.sfrf %259
  %p261 = scmp.eq.s32.totalorder %s260, 0
  %p262 = pneg %p261
  %264 = shalt.err (%p262)
  %s265 = scalar_lea.sflag [#allocation2], 8
  %266 = vsyncmov %s265
  %s267 = vpop.sfrf %266
  %p268 = scmp.eq.s32.totalorder %s267, 0
  %p269 = pneg %p268
  %271 = shalt.err (%p269)
  %s272 = scalar_lea.sflag [#allocation2], 9
  %273 = vsyncmov %s272
  %s274 = vpop.sfrf %273
  %p275 = scmp.eq.s32.totalorder %s274, 0
  %p276 = pneg %p275
  %278 = shalt.err (%p276)
  %s279 = scalar_lea.sflag [#allocation2], 10
  %280 = vsyncmov %s279
  %s281 = vpop.sfrf %280
  %p282 = scmp.eq.s32.totalorder %s281, 0
  %p283 = pneg %p282
  %285 = shalt.err (%p283)
  %s286 = scalar_lea.sflag [#allocation2], 11
  %287 = vsyncmov %s286
  %s288 = vpop.sfrf %287
  %p289 = scmp.eq.s32.totalorder %s288, 0
  %p290 = pneg %p289
  %292 = shalt.err (%p290)
  %s293 = scalar_lea.sflag [#allocation2], 12
  %294 = vsyncmov %s293
  %s295 = vpop.sfrf %294
  %p296 = scmp.eq.s32.totalorder %s295, 0
  %p297 = pneg %p296
  %299 = shalt.err (%p297)
  %s300 = scalar_lea.sflag [#allocation2], 13
  %301 = vsyncmov %s300
  %s302 = vpop.sfrf %301
  %p303 = scmp.eq.s32.totalorder %s302, 0
  %p304 = pneg %p303
  %306 = shalt.err (%p304)
  %s307 = scalar_lea.sflag [#allocation2], 14
  %308 = vsyncmov %s307
  %s309 = vpop.sfrf %308
  %p310 = scmp.eq.s32.totalorder %s309, 0
  %p311 = pneg %p310
  %313 = shalt.err (%p311)
  %s314 = scalar_lea.sflag [#allocation2], 15
  %315 = vsyncmov %s314
  %s316 = vpop.sfrf %315
  %p317 = scmp.eq.s32.totalorder %s316, 0
  %p318 = pneg %p317
  %320 = shalt.err (%p318)
  %s321 = scalar_lea.sflag [#allocation2], 16
  %322 = vsyncmov %s321
  %s323 = vpop.sfrf %322
  %p324 = scmp.eq.s32.totalorder %s323, 0
  %p325 = pneg %p324
  %327 = shalt.err (%p325)
  %s328 = scalar_lea.sflag [#allocation2], 17
  %329 = vsyncmov %s328
  %s330 = vpop.sfrf %329
  %p331 = scmp.eq.s32.totalorder %s330, 0
  %p332 = pneg %p331
  %334 = shalt.err (%p332)
  %s335 = scalar_lea.sflag [#allocation2], 18
  %336 = vsyncmov %s335
  %s337 = vpop.sfrf %336
  %p338 = scmp.eq.s32.totalorder %s337, 0
  %p339 = pneg %p338
  %341 = shalt.err (%p339)
  %s342 = scalar_lea.sflag [#allocation2], 19
  %343 = vsyncmov %s342
  %s344 = vpop.sfrf %343
  %p345 = scmp.eq.s32.totalorder %s344, 0
  %p346 = pneg %p345
  %348 = shalt.err (%p346)
  %s349 = scalar_lea.sflag [#allocation2], 20
  %350 = vsyncmov %s349
  %s351 = vpop.sfrf %350
  %p352 = scmp.eq.s32.totalorder %s351, 0
  %p353 = pneg %p352
  %355 = shalt.err (%p353)
  %s356 = scalar_lea.sflag [#allocation2], 21
  %357 = vsyncmov %s356
  %s358 = vpop.sfrf %357
  %p359 = scmp.eq.s32.totalorder %s358, 0
  %p360 = pneg %p359
  %362 = shalt.err (%p360)
  %s363 = scalar_lea.sflag [#allocation2], 22
  %364 = vsyncmov %s363
  %s365 = vpop.sfrf %364
  %p366 = scmp.eq.s32.totalorder %s365, 0
  %p367 = pneg %p366
  %369 = shalt.err (%p367)
  %s370 = scalar_lea.sflag [#allocation2], 23
  %371 = vsyncmov %s370
  %s372 = vpop.sfrf %371
  %p373 = scmp.eq.s32.totalorder %s372, 0
  %p374 = pneg %p373
  %376 = shalt.err (%p374)
  %s377 = scalar_lea.sflag [#allocation2], 24
  %378 = vsyncmov %s377
  %s379 = vpop.sfrf %378
  %p380 = scmp.eq.s32.totalorder %s379, 0
  %p381 = pneg %p380
  %383 = shalt.err (%p381)
  %s384 = scalar_lea.sflag [#allocation2], 25
  %385 = vsyncmov %s384
  %s386 = vpop.sfrf %385
  %p387 = scmp.eq.s32.totalorder %s386, 0
  %p388 = pneg %p387
  %390 = shalt.err (%p388)
  %s391 = scalar_lea.sflag [#allocation2], 26
  %392 = vsyncmov %s391
  %s393 = vpop.sfrf %392
  %p394 = scmp.eq.s32.totalorder %s393, 0
  %p395 = pneg %p394
  %397 = shalt.err (%p395)
  %s398 = scalar_lea.sflag [#allocation2], 27
  %399 = vsyncmov %s398
  %s400 = vpop.sfrf %399
  %p401 = scmp.eq.s32.totalorder %s400, 0
  %p402 = pneg %p401
  %404 = shalt.err (%p402)
  %s405 = scalar_lea.sflag [#allocation2], 28
  %406 = vsyncmov %s405
  %s407 = vpop.sfrf %406
  %p408 = scmp.eq.s32.totalorder %s407, 0
  %p409 = pneg %p408
  %411 = shalt.err (%p409)
  %s412 = scalar_lea.sflag [#allocation2], 29
  %413 = vsyncmov %s412
  %s414 = vpop.sfrf %413
  %p415 = scmp.eq.s32.totalorder %s414, 0
  %p416 = pneg %p415
  %418 = shalt.err (%p416)
  %s419 = scalar_lea.sflag [#allocation2], 30
  %420 = vsyncmov %s419
  %s421 = vpop.sfrf %420
  %p422 = scmp.eq.s32.totalorder %s421, 0
  %p423 = pneg %p422
  %425 = shalt.err (%p423)
  %s426 = scalar_lea.sflag [#allocation2], 31
  %427 = vsyncmov %s426
  %s428 = vpop.sfrf %427
  %p429 = scmp.eq.s32.totalorder %s428, 0
  %p430 = pneg %p429
  %432 = shalt.err (%p430)

</llo_original>
